<compile_context>
chip_gen: v7x
topology: tpu7x:2x2x1
jax: 0.10.0
libtpu: 0.0.40
codegen_flags: <defaults>
</compile_context>

<pallas_src>
import functools

import jax
import jax.numpy as jnp
from jax.experimental import pallas as pl
from jax.experimental.pallas import tpu as pltpu


# ------------------------------ Pallas kernel -------------------------------
def _channel_att_kernel(coef_ref, *refs):
    """One (L, TR) column tile of GraphChannelAttLayer.forward.

    refs = (adj_0, ..., adj_{C-1}, out_ref).  Every adj block covers the FULL
    row extent L so the per-column L1 normalization is exact.  coef_ref is the
    (C,) softmax(weight) vector resident in SMEM (read as scalars).
    """
    adj_refs, out_ref = refs[:-1], refs[-1]
    num_channel = len(adj_refs)

    # Phase 1: per-channel column L1 -> tiny (1, TR) scale vectors.  Only the
    # small scale vectors stay live between channels (bounds vreg pressure).
    scales = []
    for c in range(num_channel):
        xc = adj_refs[c][...].astype(jnp.float32)                 # (L, TR)
        col_l1 = jnp.sum(jnp.abs(xc), axis=0, keepdims=True)      # (1, TR)
        inv = pl.reciprocal(jnp.maximum(col_l1, 1e-12), approx=True)  # EUP
        scales.append(inv * coef_ref[c])        # fold softmax coeff (SMEM scalar)

    # Phase 2: single accumulation pass; acc + one input tile live at a time.
    acc = adj_refs[0][...].astype(jnp.float32) * scales[0]
    for c in range(1, num_channel):
        acc = acc + adj_refs[c][...].astype(jnp.float32) * scales[c]
    out_ref[...] = acc.astype(out_ref.dtype)


# --------------------------- tile-size selection -----------------------------
def _pick_col_tile(l, r, num_channel, in_bytes, out_bytes,
                   budget_bytes=12 * 1024 * 1024):
    """Largest multiple-of-128 column tile whose double-buffered working set
    2 * (C inputs + 1 output) * L * TR fits in `budget_bytes` (safe under the
    default scoped-VMEM limit on v5e/v6e/v7x)."""
    per_col = 2 * l * (num_channel * in_bytes + out_bytes)
    tr = (budget_bytes // max(per_col, 1)) // 128 * 128
    tr = max(128, min(tr, r))
    # Prefer a tile that divides R evenly (lane-dense, no boundary blocks).
    while tr > 128 and r % tr != 0:
        tr -= 128
    return tr if r % tr == 0 else r


# ------------------------------ kernel wrapper -------------------------------
def graph_channel_att(adj_list, weight, *, out_dtype=jnp.float32,
                      col_tile=None):
    """JAX equivalent of GraphChannelAttLayer.forward(adj_list).

    adj_list : list of C (L, R) arrays (f32 or bf16; cast to f32 in-kernel).
    weight   : (C, 1, 1) parameter (softmaxed over the channel axis).
    """
    num_channel = len(adj_list)
    l, r = adj_list[0].shape
    in_bytes = jnp.dtype(adj_list[0].dtype).itemsize
    out_bytes = jnp.dtype(out_dtype).itemsize

    # softmax over the C per-channel scalar weights (pure glue, C elements);
    # the kernel reads the resulting coefficients straight from SMEM.
    coef = jax.nn.softmax(weight.reshape(num_channel).astype(jnp.float32))

    tr = col_tile if col_tile is not None else _pick_col_tile(
        l, r, num_channel, in_bytes, out_bytes)
    assert r % tr == 0, "column tile must divide R"
    grid = (r // tr,)

    adj_spec = pl.BlockSpec((l, tr), lambda j: (0, j))
    in_specs = ([pl.BlockSpec(memory_space=pltpu.MemorySpace.SMEM)]
                + [adj_spec] * num_channel)
    out_spec = pl.BlockSpec((l, tr), lambda j: (0, j))

    # Double-buffered VMEM working set + headroom (capped so it is safe on
    # v7x's 64 MiB physical VMEM).
    working_set = 2 * l * tr * (num_channel * in_bytes + out_bytes)
    vmem_limit = int(min(32 * 1024 * 1024,
                         max(16 * 1024 * 1024, 2 * working_set)))

    cost = pl.CostEstimate(
        flops=4 * num_channel * l * r,
        transcendentals=num_channel * r,
        bytes_accessed=num_channel * l * r * in_bytes + l * r * out_bytes,
    )

    return pl.pallas_call(
        _channel_att_kernel,
        out_shape=jax.ShapeDtypeStruct((l, r), out_dtype),
        grid=grid,
        in_specs=in_specs,
        out_specs=out_spec,
        compiler_params=pltpu.CompilerParams(
            dimension_semantics=("parallel",),
            vmem_limit_bytes=vmem_limit,
        ),
        cost_estimate=cost,
    )(coef, *adj_list)


# --------------------------- pure-JAX reference ------------------------------
def _reference(adj_list, weight):
    stack = jnp.stack([a.astype(jnp.float32) for a in adj_list])        # (C, L, R)
    denom = jnp.maximum(jnp.sum(jnp.abs(stack), axis=1, keepdims=True), 1e-12)
    stack = stack / denom
    coef = jax.nn.softmax(weight.reshape(-1, 1, 1).astype(jnp.float32), axis=0)
    return jnp.sum(stack * coef, axis=0)


# ----------------------------------- main ------------------------------------
if __name__ == "__main__":
    C, L, R = 3, 256, 512          # 3 adjacency channels; lane-dense widths
    key = jax.random.PRNGKey(0)
    keys = jax.random.split(key, C)
    adj_list = []
    for c in range(C):
        a = jax.random.uniform(keys[c], (L, R), jnp.float32)
        adj_list.append(jnp.where(a > 0.5, a, 0.0))    # sparse-ish adjacency
    # nn.Parameter(torch.Tensor(C, 1, 1)); nn.init.constant_(weight, 0.1)
    weight = jnp.full((C, 1, 1), 0.1, jnp.float32)

    # col_tile=128 forces a 4-step column grid so the pipelined path is
    # exercised even at this small demo size.
    fused = jax.jit(functools.partial(graph_channel_att, col_tile=128))
    out = fused(adj_list, weight)
    jax.block_until_ready(out)

    expected = _reference(adj_list, weight)
    assert out.shape == (L, R)
    assert bool(jnp.isfinite(out).all())
    # loose tolerance to accommodate the EUP approximate reciprocal
    assert bool(jnp.allclose(out, expected, rtol=5e-3, atol=1e-5)), (
        "max abs err = %g" % float(jnp.max(jnp.abs(out - expected))))
    print("KERNEL_OK")
</pallas_src>

<mosaic_0001>
module attributes {stable_mosaic.version = 11 : i64} {
  func.func @_channel_att_kernel(%arg0: i32, %arg1: memref<3xf32, #tpu.memory_space<smem>>, %arg2: memref<256x128xf32, #tpu.memory_space<vmem>>, %arg3: memref<256x128xf32, #tpu.memory_space<vmem>>, %arg4: memref<256x128xf32, #tpu.memory_space<vmem>>, %arg5: memref<256x128xf32, #tpu.memory_space<vmem>>) attributes {dimension_semantics = [#tpu.dimension_semantics<parallel>], iteration_bounds = array<i64: 4>, scalar_prefetch = 0 : i64, scratch_operands = 0 : i64, tpu.core_type = #tpu.core_type<tc>, window_params = [{transform_indices = @transform_0, window_bounds = array<i64: 3>}, {transform_indices = @transform_1, window_bounds = array<i64: 256, 128>}, {transform_indices = @transform_2, window_bounds = array<i64: 256, 128>}, {transform_indices = @transform_3, window_bounds = array<i64: 256, 128>}, {transform_indices = @transform_4, window_bounds = array<i64: 256, 128>}]} {
    %c0 = arith.constant 0 : index
    %c0_0 = arith.constant 0 : index
    %0 = vector.load %arg2[%c0, %c0_0] : memref<256x128xf32, #tpu.memory_space<vmem>>, vector<256x128xf32>
    %1 = math.absf %0 : vector<256x128xf32>
    %cst = arith.constant dense<0.000000e+00> : vector<128xf32>
    %2 = vector.multi_reduction <add>, %1, %cst [0] : vector<256x128xf32> to vector<128xf32>
    %3 = vector.shape_cast %2 : vector<128xf32> to vector<1x128xf32>
    %cst_1 = arith.constant 9.99999996E-13 : f32
    %4 = vector.broadcast %cst_1 : f32 to vector<1x128xf32>
    %5 = arith.maximumf %3, %4 : vector<1x128xf32>
    %6 = tpu.reciprocal %5 {approx = true} : vector<1x128xf32> -> vector<1x128xf32>
    %c0_2 = arith.constant 0 : index
    %7 = memref.load %arg1[%c0_2] : memref<3xf32, #tpu.memory_space<smem>>
    %8 = vector.broadcast %7 : f32 to vector<1x128xf32>
    %9 = arith.mulf %6, %8 : vector<1x128xf32>
    %c0_3 = arith.constant 0 : index
    %c0_4 = arith.constant 0 : index
    %10 = vector.load %arg3[%c0_3, %c0_4] : memref<256x128xf32, #tpu.memory_space<vmem>>, vector<256x128xf32>
    %11 = math.absf %10 : vector<256x128xf32>
    %cst_5 = arith.constant dense<0.000000e+00> : vector<128xf32>
    %12 = vector.multi_reduction <add>, %11, %cst_5 [0] : vector<256x128xf32> to vector<128xf32>
    %13 = vector.shape_cast %12 : vector<128xf32> to vector<1x128xf32>
    %cst_6 = arith.constant 9.99999996E-13 : f32
    %14 = vector.broadcast %cst_6 : f32 to vector<1x128xf32>
    %15 = arith.maximumf %13, %14 : vector<1x128xf32>
    %16 = tpu.reciprocal %15 {approx = true} : vector<1x128xf32> -> vector<1x128xf32>
    %c1 = arith.constant 1 : index
    %17 = memref.load %arg1[%c1] : memref<3xf32, #tpu.memory_space<smem>>
    %18 = vector.broadcast %17 : f32 to vector<1x128xf32>
    %19 = arith.mulf %16, %18 : vector<1x128xf32>
    %c0_7 = arith.constant 0 : index
    %c0_8 = arith.constant 0 : index
    %20 = vector.load %arg4[%c0_7, %c0_8] : memref<256x128xf32, #tpu.memory_space<vmem>>, vector<256x128xf32>
    %21 = math.absf %20 : vector<256x128xf32>
    %cst_9 = arith.constant dense<0.000000e+00> : vector<128xf32>
    %22 = vector.multi_reduction <add>, %21, %cst_9 [0] : vector<256x128xf32> to vector<128xf32>
    %23 = vector.shape_cast %22 : vector<128xf32> to vector<1x128xf32>
    %cst_10 = arith.constant 9.99999996E-13 : f32
    %24 = vector.broadcast %cst_10 : f32 to vector<1x128xf32>
    %25 = arith.maximumf %23, %24 : vector<1x128xf32>
    %26 = tpu.reciprocal %25 {approx = true} : vector<1x128xf32> -> vector<1x128xf32>
    %c2 = arith.constant 2 : index
    %27 = memref.load %arg1[%c2] : memref<3xf32, #tpu.memory_space<smem>>
    %28 = vector.broadcast %27 : f32 to vector<1x128xf32>
    %29 = arith.mulf %26, %28 : vector<1x128xf32>
    %c0_11 = arith.constant 0 : index
    %c0_12 = arith.constant 0 : index
    %30 = vector.load %arg2[%c0_11, %c0_12] : memref<256x128xf32, #tpu.memory_space<vmem>>, vector<256x128xf32>
    %31 = vector.broadcast %9 : vector<1x128xf32> to vector<256x128xf32>
    %32 = arith.mulf %30, %31 : vector<256x128xf32>
    %c0_13 = arith.constant 0 : index
    %c0_14 = arith.constant 0 : index
    %33 = vector.load %arg3[%c0_13, %c0_14] : memref<256x128xf32, #tpu.memory_space<vmem>>, vector<256x128xf32>
    %34 = vector.broadcast %19 : vector<1x128xf32> to vector<256x128xf32>
    %35 = arith.mulf %33, %34 : vector<256x128xf32>
    %36 = arith.addf %32, %35 : vector<256x128xf32>
    %c0_15 = arith.constant 0 : index
    %c0_16 = arith.constant 0 : index
    %37 = vector.load %arg4[%c0_15, %c0_16] : memref<256x128xf32, #tpu.memory_space<vmem>>, vector<256x128xf32>
    %38 = vector.broadcast %29 : vector<1x128xf32> to vector<256x128xf32>
    %39 = arith.mulf %37, %38 : vector<256x128xf32>
    %40 = arith.addf %36, %39 : vector<256x128xf32>
    %c0_17 = arith.constant 0 : index
    %c0_18 = arith.constant 0 : index
    %41 = vector.load %arg5[%c0_17, %c0_18] : memref<256x128xf32, #tpu.memory_space<vmem>>, vector<256x128xf32>
    tpu.vector_store %arg5[%c0_17, %c0_18], %40 {strides = array<i32>} : memref<256x128xf32, #tpu.memory_space<vmem>>, vector<256x128xf32>,
    return
  }
  func.func @transform_0(%arg0: i32) -> i32 {
    %c0_i32 = arith.constant 0 : i32
    %c0_i32_0 = arith.constant 0 : i32
    return %c0_i32 : i32
  }
  func.func @transform_1(%arg0: i32) -> (i32, i32) {
    %c0_i32 = arith.constant 0 : i32
    %c0_i32_0 = arith.constant 0 : i32
    return %c0_i32, %arg0 : i32, i32
  }
  func.func @transform_2(%arg0: i32) -> (i32, i32) {
    %c0_i32 = arith.constant 0 : i32
    %c0_i32_0 = arith.constant 0 : i32
    return %c0_i32, %arg0 : i32, i32
  }
  func.func @transform_3(%arg0: i32) -> (i32, i32) {
    %c0_i32 = arith.constant 0 : i32
    %c0_i32_0 = arith.constant 0 : i32
    return %c0_i32, %arg0 : i32, i32
  }
  func.func @transform_4(%arg0: i32) -> (i32, i32) {
    %c0_i32 = arith.constant 0 : i32
    %c0_i32_0 = arith.constant 0 : i32
    return %c0_i32, %arg0 : i32, i32
  }
}

</mosaic_0001>

<llo_original>
// kernel: graph_channel_att.1
$region0: #{graph_channel_att.1}
  #allocation0 [shape = 'u32[]', space=smem, size = 0x4, offset = 0x4, fixed_abs, tag = 'smem constant byte address 0x4 - core index']
  #allocation1 [shape = 'u32[144,128]{1,0:T(1,128)}', space=vmem, size = 0x12000, scoped, tag = 'internal scratch']
  %s0 = inlined_call_operand.vmem [shape: f32[3], index: 0, kind: input, shape index: {}]
  %s1 = inlined_call_operand.hbm [shape: f32[256,512], index: 1, kind: input, shape index: {}]
  %s2 = inlined_call_operand.hbm [shape: f32[256,512], index: 2, kind: input, shape index: {}]
  %s3 = inlined_call_operand.hbm [shape: f32[256,512], index: 3, kind: input, shape index: {}]
  %s4 = inlined_call_operand.hbm [shape: f32[256,512], index: 4, kind: output, shape index: {}]
  %s5 = sld [smem:[#allocation0]]
  $region65: #{graph_channel_att.1} parent=0
    _
  %s7 = ssub.s32 1, %s5
  %s8 = scalar_select 0, %s7, %s5
  $region1: #{graph_channel_att.1} parent=0
    #allocation2 [shape = 'u8[512]{0}', space=smem, size = 0x200, scoped, tag = 'input window, operand 0, single buffered']
    #allocation3 [shape = 's32[2]{0}', space=sflag, size = 0x8, scoped, tag = 'scoped memory for graph_channel_att.1']
    #allocation4 [shape = 's32[2]{0}', space=sflag, size = 0x8, scoped, tag = 'scoped memory for graph_channel_att.1']
    #allocation5 [shape = 's32[2]{0}', space=sflag, size = 0x8, scoped, tag = 'scoped memory for graph_channel_att.1']
    #allocation6 [shape = 'u8[262144]{0}', space=vmem, size = 0x40000, scoped, tag = 'input window, operand 1']
    #allocation7 [shape = 'u8[262144]{0}', space=vmem, size = 0x40000, scoped, tag = 'input window, operand 2']
    #allocation8 [shape = 's32[2]{0}', space=sflag, size = 0x8, scoped, tag = 'scoped memory for graph_channel_att.1']
    #allocation9 [shape = 'u8[262144]{0}', space=vmem, size = 0x40000, scoped, tag = 'input window, operand 3']
    #allocation10 [shape = 'u8[262144]{0}', space=vmem, size = 0x40000, scoped, tag = 'output window, operand 0']
    %9 = vsyncpa [#allocation5], 0
    %10 = vsyncpa [#allocation3], 0
    %s11 = scalar_lea.sflag [#allocation3], 1
    %12 = vsyncpa %s11, 0
    %13 = vsyncpa [#allocation8], 0
    %s14 = scalar_lea.sflag [#allocation8], 1
    %15 = vsyncpa %s14, 0
    %16 = vsyncpa [#allocation4], 0
    %s17 = scalar_lea.sflag [#allocation4], 1
    %18 = vsyncpa %s17, 0
    loop: start=0, step=1, limit=6
    $region2: #{graph_channel_att.1} parent=1 // loop_pre_header
      _
    $region3: #{graph_channel_att.1} parent=1 // loop_header
      %s20 = sphi 0, %s24
      %p21 = scmp.ge.s32.totalorder %s20, 6
      %s28 = sphi 0, %s28
      %s30 = sphi 0, %s28
      %s31 = sphi 0, %s30
      %s45 = sphi 0, %s31
      %s51 = sphi 0, %s53
      %s54 = sphi 0, %s51
      %s55 = sphi 0, %s54
      %s71 = sphi 0, %s55
      %s77 = sphi 0, %s79
      %s80 = sphi 0, %s77
      %s81 = sphi 0, %s80
      %s97 = sphi 0, %s81
      %s103 = sphi 0, %s105
      %s106 = sphi 0, %s103
      %s107 = sphi 0, %s106
      %s123 = sphi 0, %s107
      %s129 = sphi 0, %s131
      %s132 = sphi 0, %s129
      %s133 = sphi 0, %s132
      %s149 = sphi 0, %s133
    $region4: #{graph_channel_att.1} parent=1 // loop_header_branch
      %23 = sbr.rel (%p21) target = $region8
    $region5: #{graph_channel_att.1} parent=1 // loop_body
      %s25 = ssub.s32 %s20, 1
      %s26 = ssub.s32 %s20, 2
      %s27 = sadd.s32 %s20, 1
      %s29 = sadd.s32 %s28, 1
      %p32 = scmp.eq.s32.totalorder %s20, 3
      %p33 = scmp.ne.s32.totalorder %s28, %s30
      %p34 = scmp.eq.s32.totalorder %s20, 0
      %p35 = por %p33, %p34
      %p36 = scmp.ne.s32.totalorder %s28, %s30
      %p37 = scmp.eq.s32.totalorder %s25, 3
      %p38 = por %p36, %p37
      %p39 = scmp.ne.s32.totalorder %s30, %s31
      %p40 = scmp.eq.s32.totalorder %s25, 0
      %p41 = por %p39, %p40
      %p42 = scmp.ne.s32.totalorder %s30, %s31
      %p43 = scmp.eq.s32.totalorder %s26, 3
      %p44 = por %p42, %p43
      %p46 = scmp.ne.s32.totalorder %s31, %s45
      %p47 = scmp.eq.s32.totalorder %s26, 0
      %p48 = por %p46, %p47
      %s49 = ssub.s32 %s20, %s27
      %p50 = scmp.eq.s32.totalorder %s49, 0
      %s52 = sadd.s32 %s51, 1
      %s53 = scalar_select %p50, %s51, %s52
      %p56 = pneg %p50
      %p57 = scmp.eq.s32.totalorder %s20, 3
      %p58 = por %p56, %p57
      %p59 = scmp.ne.s32.totalorder %s51, %s54
      %p60 = scmp.eq.s32.totalorder %s20, 0
      %p61 = por %p59, %p60
      %p62 = scmp.ne.s32.totalorder %s51, %s54
      %p63 = scmp.eq.s32.totalorder %s25, 3
      %p64 = por %p62, %p63
      %p65 = scmp.ne.s32.totalorder %s54, %s55
      %p66 = scmp.eq.s32.totalorder %s25, 0
      %p67 = por %p65, %p66
      %p68 = scmp.ne.s32.totalorder %s54, %s55
      %p69 = scmp.eq.s32.totalorder %s26, 3
      %p70 = por %p68, %p69
      %p72 = scmp.ne.s32.totalorder %s55, %s71
      %p73 = scmp.eq.s32.totalorder %s26, 0
      %p74 = por %p72, %p73
      %s75 = ssub.s32 %s20, %s27
      %p76 = scmp.eq.s32.totalorder %s75, 0
      %s78 = sadd.s32 %s77, 1
      %s79 = scalar_select %p76, %s77, %s78
      %p82 = pneg %p76
      %p83 = scmp.eq.s32.totalorder %s20, 3
      %p84 = por %p82, %p83
      %p85 = scmp.ne.s32.totalorder %s77, %s80
      %p86 = scmp.eq.s32.totalorder %s20, 0
      %p87 = por %p85, %p86
      %p88 = scmp.ne.s32.totalorder %s77, %s80
      %p89 = scmp.eq.s32.totalorder %s25, 3
      %p90 = por %p88, %p89
      %p91 = scmp.ne.s32.totalorder %s80, %s81
      %p92 = scmp.eq.s32.totalorder %s25, 0
      %p93 = por %p91, %p92
      %p94 = scmp.ne.s32.totalorder %s80, %s81
      %p95 = scmp.eq.s32.totalorder %s26, 3
      %p96 = por %p94, %p95
      %p98 = scmp.ne.s32.totalorder %s81, %s97
      %p99 = scmp.eq.s32.totalorder %s26, 0
      %p100 = por %p98, %p99
      %s101 = ssub.s32 %s20, %s27
      %p102 = scmp.eq.s32.totalorder %s101, 0
      %s104 = sadd.s32 %s103, 1
      %s105 = scalar_select %p102, %s103, %s104
      %p108 = pneg %p102
      %p109 = scmp.eq.s32.totalorder %s20, 3
      %p110 = por %p108, %p109
      %p111 = scmp.ne.s32.totalorder %s103, %s106
      %p112 = scmp.eq.s32.totalorder %s20, 0
      %p113 = por %p111, %p112
      %p114 = scmp.ne.s32.totalorder %s103, %s106
      %p115 = scmp.eq.s32.totalorder %s25, 3
      %p116 = por %p114, %p115
      %p117 = scmp.ne.s32.totalorder %s106, %s107
      %p118 = scmp.eq.s32.totalorder %s25, 0
      %p119 = por %p117, %p118
      %p120 = scmp.ne.s32.totalorder %s106, %s107
      %p121 = scmp.eq.s32.totalorder %s26, 3
      %p122 = por %p120, %p121
      %p124 = scmp.ne.s32.totalorder %s107, %s123
      %p125 = scmp.eq.s32.totalorder %s26, 0
      %p126 = por %p124, %p125
      %s127 = ssub.s32 %s20, %s27
      %p128 = scmp.eq.s32.totalorder %s127, 0
      %s130 = sadd.s32 %s129, 1
      %s131 = scalar_select %p128, %s129, %s130
      %p134 = pneg %p128
      %p135 = scmp.eq.s32.totalorder %s20, 3
      %p136 = por %p134, %p135
      %p137 = scmp.ne.s32.totalorder %s129, %s132
      %p138 = scmp.eq.s32.totalorder %s20, 0
      %p139 = por %p137, %p138
      %p140 = scmp.ne.s32.totalorder %s129, %s132
      %p141 = scmp.eq.s32.totalorder %s25, 3
      %p142 = por %p140, %p141
      %p143 = scmp.ne.s32.totalorder %s132, %s133
      %p144 = scmp.eq.s32.totalorder %s25, 0
      %p145 = por %p143, %p144
      %p146 = scmp.ne.s32.totalorder %s132, %s133
      %p147 = scmp.eq.s32.totalorder %s26, 3
      %p148 = por %p146, %p147
      %p150 = scmp.ne.s32.totalorder %s133, %s149
      %p151 = scmp.eq.s32.totalorder %s26, 0
      %p152 = por %p150, %p151
      %p153 = scmp.le.s32.totalorder 1, %s20
      %p154 = scmp.lt.s32.totalorder %s20, 5
      %p155 = pnand %p153, %p154
      %p156 = pneg %p155
      // Predicated region
      $region9: #{graph_channel_att.1} parent=5 // pred_check
        _
      $region10: #{graph_channel_att.1} parent=5 // pred_check_branch
        %158 = sbr.rel (%p155) target = $region12
      $region11: #{graph_channel_att.1} parent=5 // pred_region
        %s159 = ssub.s32 %s20, 1
        // Predicated region
        $region13: #{graph_channel_att.1} parent=11 // pred_check
          %p160 = pneg %p41
        $region14: #{graph_channel_att.1} parent=11 // pred_check_branch
          %162 = sbr.rel (%p160) target = $region16
        $region15: #{graph_channel_att.1} parent=11 // pred_region
          %s164 = ssub.s32 16, 16
          %165 = vsyncadd [#allocation5], %s164
          %s167 = sshll.u32 %s0, 4
          %s168 = int_to_ptr.vmem [resolvable:$true] %s167
          %170 = dma.vmem_to_smem %s168, 16, [#allocation2], [#allocation5]
        $region16: #{graph_channel_att.1} parent=11 // pred_fallthru
          _
      $region12: #{graph_channel_att.1} parent=5 // pred_fallthru
        _
      %p171 = scmp.lt.s32.totalorder %s20, 4
      // Predicated region
      $region17: #{graph_channel_att.1} parent=5 // pred_check
        %p172 = pneg %p171
      $region18: #{graph_channel_att.1} parent=5 // pred_check_branch
        %174 = sbr.rel (%p172) target = $region20
      $region19: #{graph_channel_att.1} parent=5 // pred_region
        // Predicated region
        $region21: #{graph_channel_att.1} parent=19 // pred_check
          %p175 = pneg %p61
        $region22: #{graph_channel_att.1} parent=19 // pred_check_branch
          %177 = sbr.rel (%p175) target = $region24
        $region23: #{graph_channel_att.1} parent=19 // pred_region
          %s178 = sand.u32 %s51, 1
          %s179 = scalar_lea.sflag [#allocation3], %s178
          %s180 = sand.u32 %s51, 1
          %s181 = smul.addr %s180, 256
          %s182 = scalar_lea.vmem [#allocation6], %s181
          %s184 = ssub.s32 4096, 4096
          %185 = vsyncadd %s179, %s184
          %s186 = smul.addr %s20, 128
          %s187 = scalar_lea.hbm %s1, %s186
          %s188 = sshll.u32 %s182, 4
          %s189 = int_to_ptr.vmem [resolvable:$true] %s188
          %194 = dma.hbm_to_vmem [thread:$0]  %s187, 4096, %s189, %s179, 512, 128, 8
        $region24: #{graph_channel_att.1} parent=19 // pred_fallthru
          _
        // Predicated region
        $region25: #{graph_channel_att.1} parent=19 // pred_check
          %p195 = pneg %p87
        $region26: #{graph_channel_att.1} parent=19 // pred_check_branch
          %197 = sbr.rel (%p195) target = $region28
        $region27: #{graph_channel_att.1} parent=19 // pred_region
          %s198 = sand.u32 %s20, 1
          %s199 = scalar_lea.sflag [#allocation8], %s198
          %s200 = sand.u32 %s77, 1
          %s201 = smul.addr %s200, 256
          %s202 = scalar_lea.vmem [#allocation7], %s201
          %s204 = ssub.s32 4096, 4096
          %205 = vsyncadd %s199, %s204
          %s206 = smul.addr %s20, 128
          %s207 = scalar_lea.hbm %s2, %s206
          %s208 = sshll.u32 %s202, 4
          %s209 = int_to_ptr.vmem [resolvable:$true] %s208
          %214 = dma.hbm_to_vmem [thread:$0]  %s207, 4096, %s209, %s199, 512, 128, 8
        $region28: #{graph_channel_att.1} parent=19 // pred_fallthru
          _
        // Predicated region
        $region29: #{graph_channel_att.1} parent=19 // pred_check
          %p215 = pneg %p113
        $region30: #{graph_channel_att.1} parent=19 // pred_check_branch
          %217 = sbr.rel (%p215) target = $region32
        $region31: #{graph_channel_att.1} parent=19 // pred_region
          %s218 = sand.u32 %s20, 1
          %s219 = scalar_lea.sflag [#allocation8], %s218
          %s220 = sand.u32 %s103, 1
          %s221 = smul.addr %s220, 256
          %s222 = scalar_lea.vmem [#allocation9], %s221
          %s224 = ssub.s32 4096, 4096
          %225 = vsyncadd %s219, %s224
          %s226 = smul.addr %s20, 128
          %s227 = scalar_lea.hbm %s3, %s226
          %s228 = sshll.u32 %s222, 4
          %s229 = int_to_ptr.vmem [resolvable:$true] %s228
          %234 = dma.hbm_to_vmem [thread:$0]  %s227, 4096, %s229, %s219, 512, 128, 8
        $region32: #{graph_channel_att.1} parent=19 // pred_fallthru
          _
      $region20: #{graph_channel_att.1} parent=5 // pred_fallthru
        _
      %p235 = scmp.le.s32.totalorder 1, %s20
      %p236 = scmp.lt.s32.totalorder %s20, 5
      %p237 = pnand %p235, %p236
      %p238 = pneg %p237
      // Predicated region
      $region33: #{graph_channel_att.1} parent=5 // pred_check
        _
      $region34: #{graph_channel_att.1} parent=5 // pred_check_branch
        %240 = sbr.rel (%p237) target = $region36
      $region35: #{graph_channel_att.1} parent=5 // pred_region
        %s241 = ssub.s32 %s20, 1
        // Predicated region
        $region37: #{graph_channel_att.1} parent=35 // pred_check
          %p242 = pneg %p41
        $region38: #{graph_channel_att.1} parent=35 // pred_check_branch
          %244 = sbr.rel (%p242) target = $region40
        $region39: #{graph_channel_att.1} parent=35 // pred_region
          %245 = dma.done [#allocation5], 16
        $region40: #{graph_channel_att.1} parent=35 // pred_fallthru
          _
        %s246 = sand.u32 %s54, 1
        %s247 = scalar_lea.sflag [#allocation3], %s246
        %s248 = sand.u32 %s54, 1
        %s249 = smul.addr %s248, 256
        %s250 = scalar_lea.vmem [#allocation6], %s249
        // Predicated region
        $region41: #{graph_channel_att.1} parent=35 // pred_check
          %p251 = pneg %p67
        $region42: #{graph_channel_att.1} parent=35 // pred_check_branch
          %253 = sbr.rel (%p251) target = $region44
        $region43: #{graph_channel_att.1} parent=35 // pred_region
          %254 = dma.done %s247, 4096
        $region44: #{graph_channel_att.1} parent=35 // pred_fallthru
          _
        %s255 = sand.u32 %s25, 1
        %s256 = scalar_lea.sflag [#allocation8], %s255
        %s257 = sand.u32 %s80, 1
        %s258 = smul.addr %s257, 256
        %s259 = scalar_lea.vmem [#allocation7], %s258
        // Predicated region
        $region45: #{graph_channel_att.1} parent=35 // pred_check
          %p260 = pneg %p93
        $region46: #{graph_channel_att.1} parent=35 // pred_check_branch
          %262 = sbr.rel (%p260) target = $region48
        $region47: #{graph_channel_att.1} parent=35 // pred_region
          %263 = dma.done %s256, 4096
        $region48: #{graph_channel_att.1} parent=35 // pred_fallthru
          _
        %s264 = sand.u32 %s25, 1
        %s265 = scalar_lea.sflag [#allocation8], %s264
        %s266 = sand.u32 %s106, 1
        %s267 = smul.addr %s266, 256
        %s268 = scalar_lea.vmem [#allocation9], %s267
        // Predicated region
        $region49: #{graph_channel_att.1} parent=35 // pred_check
          %p269 = pneg %p119
        $region50: #{graph_channel_att.1} parent=35 // pred_check_branch
          %271 = sbr.rel (%p269) target = $region52
        $region51: #{graph_channel_att.1} parent=35 // pred_region
          %272 = dma.done %s265, 4096
        $region52: #{graph_channel_att.1} parent=35 // pred_fallthru
          _
        %273 = sfence
        %p274 = pneg %p41
        %p275 = pneg %p38
        %s276 = sand.u32 %s54, 1
        %s277 = scalar_lea.sflag [#allocation3], %s276
        %s278 = sand.u32 %s54, 1
        %s279 = smul.addr %s278, 256
        %s280 = scalar_lea.vmem [#allocation6], %s279
        %p281 = pneg %p67
        %p282 = pneg %p64
        %s283 = sand.u32 %s25, 1
        %s284 = scalar_lea.sflag [#allocation8], %s283
        %s285 = sand.u32 %s80, 1
        %s286 = smul.addr %s285, 256
        %s287 = scalar_lea.vmem [#allocation7], %s286
        %p288 = pneg %p93
        %p289 = pneg %p90
        %s290 = sand.u32 %s25, 1
        %s291 = scalar_lea.sflag [#allocation8], %s290
        %s292 = sand.u32 %s106, 1
        %s293 = smul.addr %s292, 256
        %s294 = scalar_lea.vmem [#allocation9], %s293
        %p295 = pneg %p119
        %p296 = pneg %p116
        %p297 = pneg %p145
        %p298 = pneg %p142
        %s299 = sand.u32 %s132, 1
        %s300 = scalar_lea.sflag [#allocation4], %s299
        %s301 = sand.u32 %s132, 1
        %s302 = smul.addr %s301, 256
        %s303 = scalar_lea.vmem [#allocation10], %s302
        %v304 = vld [vmem:[%s250] sm:$0xff]
        %v305 = vld [vmem:[%s250 + $0x8] sm:$0xff]
        %v306 = vld [vmem:[%s250 + $0x10] sm:$0xff]
        %v307 = vld [vmem:[%s250 + $0x18] sm:$0xff]
        %v308 = vld [vmem:[%s250 + $0x20] sm:$0xff]
        %v309 = vld [vmem:[%s250 + $0x28] sm:$0xff]
        %v310 = vld [vmem:[%s250 + $0x30] sm:$0xff]
        %v311 = vld [vmem:[%s250 + $0x38] sm:$0xff]
        %v312 = vld [vmem:[%s250 + $0x40] sm:$0xff]
        %v313 = vld [vmem:[%s250 + $0x48] sm:$0xff]
        %v314 = vld [vmem:[%s250 + $0x50] sm:$0xff]
        %v315 = vld [vmem:[%s250 + $0x58] sm:$0xff]
        %v316 = vld [vmem:[%s250 + $0x60] sm:$0xff]
        %v317 = vld [vmem:[%s250 + $0x68] sm:$0xff]
        %v318 = vld [vmem:[%s250 + $0x70] sm:$0xff]
        %v319 = vld [vmem:[%s250 + $0x78] sm:$0xff]
        %v320 = vld [vmem:[%s250 + $0x80] sm:$0xff]
        %v321 = vld [vmem:[%s250 + $0x88] sm:$0xff]
        %v322 = vld [vmem:[%s250 + $0x90] sm:$0xff]
        %v323 = vld [vmem:[%s250 + $0x98] sm:$0xff]
        %v324 = vld [vmem:[%s250 + $0xa0] sm:$0xff]
        %v325 = vld [vmem:[%s250 + $0xa8] sm:$0xff]
        %v326 = vld [vmem:[%s250 + $0xb0] sm:$0xff]
        %v327 = vld [vmem:[%s250 + $0xb8] sm:$0xff]
        %v328 = vld [vmem:[%s250 + $0xc0] sm:$0xff]
        %v329 = vld [vmem:[%s250 + $0xc8] sm:$0xff]
        %v330 = vld [vmem:[%s250 + $0xd0] sm:$0xff]
        %v331 = vld [vmem:[%s250 + $0xd8] sm:$0xff]
        %v332 = vld [vmem:[%s250 + $0xe0] sm:$0xff]
        %v333 = vld [vmem:[%s250 + $0xe8] sm:$0xff]
        %v334 = vld [vmem:[%s250 + $0xf0] sm:$0xff]
        %v335 = vld [vmem:[%s250 + $0xf8] sm:$0xff]
        %v336 = vand.u32 2147483647, %v304
        %v337 = vand.u32 2147483647, %v305
        %v338 = vand.u32 2147483647, %v306
        %v339 = vand.u32 2147483647, %v307
        %v340 = vand.u32 2147483647, %v308
        %v341 = vand.u32 2147483647, %v309
        %v342 = vand.u32 2147483647, %v310
        %v343 = vand.u32 2147483647, %v311
        %v344 = vand.u32 2147483647, %v312
        %v345 = vand.u32 2147483647, %v313
        %v346 = vand.u32 2147483647, %v314
        %v347 = vand.u32 2147483647, %v315
        %v348 = vand.u32 2147483647, %v316
        %v349 = vand.u32 2147483647, %v317
        %v350 = vand.u32 2147483647, %v318
        %v351 = vand.u32 2147483647, %v319
        %v352 = vand.u32 2147483647, %v320
        %v353 = vand.u32 2147483647, %v321
        %v354 = vand.u32 2147483647, %v322
        %v355 = vand.u32 2147483647, %v323
        %v356 = vand.u32 2147483647, %v324
        %v357 = vand.u32 2147483647, %v325
        %v358 = vand.u32 2147483647, %v326
        %v359 = vand.u32 2147483647, %v327
        %v360 = vand.u32 2147483647, %v328
        %v361 = vand.u32 2147483647, %v329
        %v362 = vand.u32 2147483647, %v330
        %v363 = vand.u32 2147483647, %v331
        %v364 = vand.u32 2147483647, %v332
        %v365 = vand.u32 2147483647, %v333
        %v366 = vand.u32 2147483647, %v334
        %v367 = vand.u32 2147483647, %v335
        %v368 = vadd.f32 %v336, %v337
        %v369 = vadd.f32 %v368, %v338
        %v370 = vadd.f32 %v369, %v339
        %v371 = vadd.f32 %v370, %v340
        %v372 = vadd.f32 %v371, %v341
        %v373 = vadd.f32 %v372, %v342
        %v374 = vadd.f32 %v373, %v343
        %v375 = vadd.f32 %v374, %v344
        %v376 = vadd.f32 %v375, %v345
        %v377 = vadd.f32 %v376, %v346
        %v378 = vadd.f32 %v377, %v347
        %v379 = vadd.f32 %v378, %v348
        %v380 = vadd.f32 %v379, %v349
        %v381 = vadd.f32 %v380, %v350
        %v382 = vadd.f32 %v381, %v351
        %v383 = vadd.f32 %v382, %v352
        %v384 = vadd.f32 %v383, %v353
        %v385 = vadd.f32 %v384, %v354
        %v386 = vadd.f32 %v385, %v355
        %v387 = vadd.f32 %v386, %v356
        %v388 = vadd.f32 %v387, %v357
        %v389 = vadd.f32 %v388, %v358
        %v390 = vadd.f32 %v389, %v359
        %v391 = vadd.f32 %v390, %v360
        %v392 = vadd.f32 %v391, %v361
        %v393 = vadd.f32 %v392, %v362
        %v394 = vadd.f32 %v393, %v363
        %v395 = vadd.f32 %v394, %v364
        %v396 = vadd.f32 %v395, %v365
        %v397 = vadd.f32 %v396, %v366
        %v398 = vadd.f32 %v397, %v367
        %v399 = vrot.slane %v398, 4
        %v400 = vadd.f32 %v398, %v399
        %v401 = vrot.slane %v400, 2
        %v402 = vadd.f32 %v400, %v401
        %v403 = vrot.slane %v402, 1
        %v404 = vadd.f32 %v402, %v403
        %v405 = vmax.f32 %v404, 1e-12
        %v406 = vrcp.pop %v405
        %s407 = sld [smem:[#allocation2]]
        %v408 = vstv %s407
        %v409 = vmul.f32 %v406, %v408
        %v410 = vld [vmem:[%s259] sm:$0xff]
        %v411 = vld [vmem:[%s259 + $0x8] sm:$0xff]
        %v412 = vld [vmem:[%s259 + $0x10] sm:$0xff]
        %v413 = vld [vmem:[%s259 + $0x18] sm:$0xff]
        %v414 = vld [vmem:[%s259 + $0x20] sm:$0xff]
        %v415 = vld [vmem:[%s259 + $0x28] sm:$0xff]
        %v416 = vld [vmem:[%s259 + $0x30] sm:$0xff]
        %v417 = vld [vmem:[%s259 + $0x38] sm:$0xff]
        %v418 = vld [vmem:[%s259 + $0x40] sm:$0xff]
        %v419 = vld [vmem:[%s259 + $0x48] sm:$0xff]
        %v420 = vld [vmem:[%s259 + $0x50] sm:$0xff]
        %v421 = vld [vmem:[%s259 + $0x58] sm:$0xff]
        %v422 = vld [vmem:[%s259 + $0x60] sm:$0xff]
        %v423 = vld [vmem:[%s259 + $0x68] sm:$0xff]
        %v424 = vld [vmem:[%s259 + $0x70] sm:$0xff]
        %v425 = vld [vmem:[%s259 + $0x78] sm:$0xff]
        %v426 = vld [vmem:[%s259 + $0x80] sm:$0xff]
        %v427 = vld [vmem:[%s259 + $0x88] sm:$0xff]
        %v428 = vld [vmem:[%s259 + $0x90] sm:$0xff]
        %v429 = vld [vmem:[%s259 + $0x98] sm:$0xff]
        %v430 = vld [vmem:[%s259 + $0xa0] sm:$0xff]
        %v431 = vld [vmem:[%s259 + $0xa8] sm:$0xff]
        %v432 = vld [vmem:[%s259 + $0xb0] sm:$0xff]
        %v433 = vld [vmem:[%s259 + $0xb8] sm:$0xff]
        %v434 = vld [vmem:[%s259 + $0xc0] sm:$0xff]
        %v435 = vld [vmem:[%s259 + $0xc8] sm:$0xff]
        %v436 = vld [vmem:[%s259 + $0xd0] sm:$0xff]
        %v437 = vld [vmem:[%s259 + $0xd8] sm:$0xff]
        %v438 = vld [vmem:[%s259 + $0xe0] sm:$0xff]
        %v439 = vld [vmem:[%s259 + $0xe8] sm:$0xff]
        %v440 = vld [vmem:[%s259 + $0xf0] sm:$0xff]
        %v441 = vld [vmem:[%s259 + $0xf8] sm:$0xff]
        %v442 = vand.u32 2147483647, %v410
        %v443 = vand.u32 2147483647, %v411
        %v444 = vand.u32 2147483647, %v412
        %v445 = vand.u32 2147483647, %v413
        %v446 = vand.u32 2147483647, %v414
        %v447 = vand.u32 2147483647, %v415
        %v448 = vand.u32 2147483647, %v416
        %v449 = vand.u32 2147483647, %v417
        %v450 = vand.u32 2147483647, %v418
        %v451 = vand.u32 2147483647, %v419
        %v452 = vand.u32 2147483647, %v420
        %v453 = vand.u32 2147483647, %v421
        %v454 = vand.u32 2147483647, %v422
        %v455 = vand.u32 2147483647, %v423
        %v456 = vand.u32 2147483647, %v424
        %v457 = vand.u32 2147483647, %v425
        %v458 = vand.u32 2147483647, %v426
        %v459 = vand.u32 2147483647, %v427
        %v460 = vand.u32 2147483647, %v428
        %v461 = vand.u32 2147483647, %v429
        %v462 = vand.u32 2147483647, %v430
        %v463 = vand.u32 2147483647, %v431
        %v464 = vand.u32 2147483647, %v432
        %v465 = vand.u32 2147483647, %v433
        %v466 = vand.u32 2147483647, %v434
        %v467 = vand.u32 2147483647, %v435
        %v468 = vand.u32 2147483647, %v436
        %v469 = vand.u32 2147483647, %v437
        %v470 = vand.u32 2147483647, %v438
        %v471 = vand.u32 2147483647, %v439
        %v472 = vand.u32 2147483647, %v440
        %v473 = vand.u32 2147483647, %v441
        %v474 = vadd.f32 %v442, %v443
        %v475 = vadd.f32 %v474, %v444
        %v476 = vadd.f32 %v475, %v445
        %v477 = vadd.f32 %v476, %v446
        %v478 = vadd.f32 %v477, %v447
        %v479 = vadd.f32 %v478, %v448
        %v480 = vadd.f32 %v479, %v449
        %v481 = vadd.f32 %v480, %v450
        %v482 = vadd.f32 %v481, %v451
        %v483 = vadd.f32 %v482, %v452
        %v484 = vadd.f32 %v483, %v453
        %v485 = vadd.f32 %v484, %v454
        %v486 = vadd.f32 %v485, %v455
        %v487 = vadd.f32 %v486, %v456
        %v488 = vadd.f32 %v487, %v457
        %v489 = vadd.f32 %v488, %v458
        %v490 = vadd.f32 %v489, %v459
        %v491 = vadd.f32 %v490, %v460
        %v492 = vadd.f32 %v491, %v461
        %v493 = vadd.f32 %v492, %v462
        %v494 = vadd.f32 %v493, %v463
        %v495 = vadd.f32 %v494, %v464
        %v496 = vadd.f32 %v495, %v465
        %v497 = vadd.f32 %v496, %v466
        %v498 = vadd.f32 %v497, %v467
        %v499 = vadd.f32 %v498, %v468
        %v500 = vadd.f32 %v499, %v469
        %v501 = vadd.f32 %v500, %v470
        %v502 = vadd.f32 %v501, %v471
        %v503 = vadd.f32 %v502, %v472
        %v504 = vadd.f32 %v503, %v473
        %v505 = vrot.slane %v504, 4
        %v506 = vadd.f32 %v504, %v505
        %v507 = vrot.slane %v506, 2
        %v508 = vadd.f32 %v506, %v507
        %v509 = vrot.slane %v508, 1
        %v510 = vadd.f32 %v508, %v509
        %v511 = vmax.f32 %v510, 1e-12
        %v512 = vrcp.pop %v511
        %s513 = sld [smem:[#allocation2 + $0x1]]
        %v514 = vstv %s513
        %v515 = vmul.f32 %v512, %v514
        %v516 = vld [vmem:[%s268] sm:$0xff]
        %v517 = vld [vmem:[%s268 + $0x8] sm:$0xff]
        %v518 = vld [vmem:[%s268 + $0x10] sm:$0xff]
        %v519 = vld [vmem:[%s268 + $0x18] sm:$0xff]
        %v520 = vld [vmem:[%s268 + $0x20] sm:$0xff]
        %v521 = vld [vmem:[%s268 + $0x28] sm:$0xff]
        %v522 = vld [vmem:[%s268 + $0x30] sm:$0xff]
        %v523 = vld [vmem:[%s268 + $0x38] sm:$0xff]
        %v524 = vld [vmem:[%s268 + $0x40] sm:$0xff]
        %v525 = vld [vmem:[%s268 + $0x48] sm:$0xff]
        %v526 = vld [vmem:[%s268 + $0x50] sm:$0xff]
        %v527 = vld [vmem:[%s268 + $0x58] sm:$0xff]
        %v528 = vld [vmem:[%s268 + $0x60] sm:$0xff]
        %v529 = vld [vmem:[%s268 + $0x68] sm:$0xff]
        %v530 = vld [vmem:[%s268 + $0x70] sm:$0xff]
        %v531 = vld [vmem:[%s268 + $0x78] sm:$0xff]
        %v532 = vld [vmem:[%s268 + $0x80] sm:$0xff]
        %v533 = vld [vmem:[%s268 + $0x88] sm:$0xff]
        %v534 = vld [vmem:[%s268 + $0x90] sm:$0xff]
        %v535 = vld [vmem:[%s268 + $0x98] sm:$0xff]
        %v536 = vld [vmem:[%s268 + $0xa0] sm:$0xff]
        %v537 = vld [vmem:[%s268 + $0xa8] sm:$0xff]
        %v538 = vld [vmem:[%s268 + $0xb0] sm:$0xff]
        %v539 = vld [vmem:[%s268 + $0xb8] sm:$0xff]
        %v540 = vld [vmem:[%s268 + $0xc0] sm:$0xff]
        %v541 = vld [vmem:[%s268 + $0xc8] sm:$0xff]
        %v542 = vld [vmem:[%s268 + $0xd0] sm:$0xff]
        %v543 = vld [vmem:[%s268 + $0xd8] sm:$0xff]
        %v544 = vld [vmem:[%s268 + $0xe0] sm:$0xff]
        %v545 = vld [vmem:[%s268 + $0xe8] sm:$0xff]
        %v546 = vld [vmem:[%s268 + $0xf0] sm:$0xff]
        %v547 = vld [vmem:[%s268 + $0xf8] sm:$0xff]
        %v548 = vand.u32 2147483647, %v516
        %v549 = vand.u32 2147483647, %v517
        %v550 = vand.u32 2147483647, %v518
        %v551 = vand.u32 2147483647, %v519
        %v552 = vand.u32 2147483647, %v520
        %v553 = vand.u32 2147483647, %v521
        %v554 = vand.u32 2147483647, %v522
        %v555 = vand.u32 2147483647, %v523
        %v556 = vand.u32 2147483647, %v524
        %v557 = vand.u32 2147483647, %v525
        %v558 = vand.u32 2147483647, %v526
        %v559 = vand.u32 2147483647, %v527
        %v560 = vand.u32 2147483647, %v528
        %v561 = vand.u32 2147483647, %v529
        %v562 = vand.u32 2147483647, %v530
        %v563 = vand.u32 2147483647, %v531
        %v564 = vand.u32 2147483647, %v532
        %v565 = vand.u32 2147483647, %v533
        %v566 = vand.u32 2147483647, %v534
        %v567 = vand.u32 2147483647, %v535
        %v568 = vand.u32 2147483647, %v536
        %v569 = vand.u32 2147483647, %v537
        %v570 = vand.u32 2147483647, %v538
        %v571 = vand.u32 2147483647, %v539
        %v572 = vand.u32 2147483647, %v540
        %v573 = vand.u32 2147483647, %v541
        %v574 = vand.u32 2147483647, %v542
        %v575 = vand.u32 2147483647, %v543
        %v576 = vand.u32 2147483647, %v544
        %v577 = vand.u32 2147483647, %v545
        %v578 = vand.u32 2147483647, %v546
        %v579 = vand.u32 2147483647, %v547
        %v580 = vadd.f32 %v548, %v549
        %v581 = vadd.f32 %v580, %v550
        %v582 = vadd.f32 %v581, %v551
        %v583 = vadd.f32 %v582, %v552
        %v584 = vadd.f32 %v583, %v553
        %v585 = vadd.f32 %v584, %v554
        %v586 = vadd.f32 %v585, %v555
        %v587 = vadd.f32 %v586, %v556
        %v588 = vadd.f32 %v587, %v557
        %v589 = vadd.f32 %v588, %v558
        %v590 = vadd.f32 %v589, %v559
        %v591 = vadd.f32 %v590, %v560
        %v592 = vadd.f32 %v591, %v561
        %v593 = vadd.f32 %v592, %v562
        %v594 = vadd.f32 %v593, %v563
        %v595 = vadd.f32 %v594, %v564
        %v596 = vadd.f32 %v595, %v565
        %v597 = vadd.f32 %v596, %v566
        %v598 = vadd.f32 %v597, %v567
        %v599 = vadd.f32 %v598, %v568
        %v600 = vadd.f32 %v599, %v569
        %v601 = vadd.f32 %v600, %v570
        %v602 = vadd.f32 %v601, %v571
        %v603 = vadd.f32 %v602, %v572
        %v604 = vadd.f32 %v603, %v573
        %v605 = vadd.f32 %v604, %v574
        %v606 = vadd.f32 %v605, %v575
        %v607 = vadd.f32 %v606, %v576
        %v608 = vadd.f32 %v607, %v577
        %v609 = vadd.f32 %v608, %v578
        %v610 = vadd.f32 %v609, %v579
        %v611 = vrot.slane %v610, 4
        %v612 = vadd.f32 %v610, %v611
        %v613 = vrot.slane %v612, 2
        %v614 = vadd.f32 %v612, %v613
        %v615 = vrot.slane %v614, 1
        %v616 = vadd.f32 %v614, %v615
        %v617 = vmax.f32 %v616, 1e-12
        %v618 = vrcp.pop %v617
        %s619 = sld [smem:[#allocation2 + $0x2]]
        %v620 = vstv %s619
        %v621 = vmul.f32 %v618, %v620
        %v622 = vmul.f32 %v304, %v409
        %v623 = vmul.f32 %v305, %v409
        %v624 = vmul.f32 %v306, %v409
        %v625 = vmul.f32 %v307, %v409
        %v626 = vmul.f32 %v308, %v409
        %v627 = vmul.f32 %v309, %v409
        %v628 = vmul.f32 %v310, %v409
        %v629 = vmul.f32 %v311, %v409
        %v630 = vmul.f32 %v312, %v409
        %v631 = vmul.f32 %v313, %v409
        %v632 = vmul.f32 %v314, %v409
        %v633 = vmul.f32 %v315, %v409
        %v634 = vmul.f32 %v316, %v409
        %v635 = vmul.f32 %v317, %v409
        %v636 = vmul.f32 %v318, %v409
        %v637 = vmul.f32 %v319, %v409
        %v638 = vmul.f32 %v320, %v409
        %v639 = vmul.f32 %v321, %v409
        %v640 = vmul.f32 %v322, %v409
        %v641 = vmul.f32 %v323, %v409
        %v642 = vmul.f32 %v324, %v409
        %v643 = vmul.f32 %v325, %v409
        %v644 = vmul.f32 %v326, %v409
        %v645 = vmul.f32 %v327, %v409
        %v646 = vmul.f32 %v328, %v409
        %v647 = vmul.f32 %v329, %v409
        %v648 = vmul.f32 %v330, %v409
        %v649 = vmul.f32 %v331, %v409
        %v650 = vmul.f32 %v332, %v409
        %v651 = vmul.f32 %v333, %v409
        %v652 = vmul.f32 %v334, %v409
        %v653 = vmul.f32 %v335, %v409
        %v654 = vmul.f32 %v410, %v515
        %v655 = vmul.f32 %v411, %v515
        %v656 = vmul.f32 %v412, %v515
        %v657 = vmul.f32 %v413, %v515
        %v658 = vmul.f32 %v414, %v515
        %v659 = vmul.f32 %v415, %v515
        %v660 = vmul.f32 %v416, %v515
        %v661 = vmul.f32 %v417, %v515
        %v662 = vmul.f32 %v418, %v515
        %v663 = vmul.f32 %v419, %v515
        %v664 = vmul.f32 %v420, %v515
        %v665 = vmul.f32 %v421, %v515
        %v666 = vmul.f32 %v422, %v515
        %v667 = vmul.f32 %v423, %v515
        %v668 = vmul.f32 %v424, %v515
        %v669 = vmul.f32 %v425, %v515
        %v670 = vmul.f32 %v426, %v515
        %v671 = vmul.f32 %v427, %v515
        %v672 = vmul.f32 %v428, %v515
        %v673 = vmul.f32 %v429, %v515
        %v674 = vmul.f32 %v430, %v515
        %v675 = vmul.f32 %v431, %v515
        %v676 = vmul.f32 %v432, %v515
        %v677 = vmul.f32 %v433, %v515
        %v678 = vmul.f32 %v434, %v515
        %v679 = vmul.f32 %v435, %v515
        %v680 = vmul.f32 %v436, %v515
        %v681 = vmul.f32 %v437, %v515
        %v682 = vmul.f32 %v438, %v515
        %v683 = vmul.f32 %v439, %v515
        %v684 = vmul.f32 %v440, %v515
        %v685 = vmul.f32 %v441, %v515
        %v686 = vadd.f32 %v622, %v654
        %v687 = vadd.f32 %v623, %v655
        %v688 = vadd.f32 %v624, %v656
        %v689 = vadd.f32 %v625, %v657
        %v690 = vadd.f32 %v626, %v658
        %v691 = vadd.f32 %v627, %v659
        %v692 = vadd.f32 %v628, %v660
        %v693 = vadd.f32 %v629, %v661
        %v694 = vadd.f32 %v630, %v662
        %v695 = vadd.f32 %v631, %v663
        %v696 = vadd.f32 %v632, %v664
        %v697 = vadd.f32 %v633, %v665
        %v698 = vadd.f32 %v634, %v666
        %v699 = vadd.f32 %v635, %v667
        %v700 = vadd.f32 %v636, %v668
        %v701 = vadd.f32 %v637, %v669
        %v702 = vadd.f32 %v638, %v670
        %v703 = vadd.f32 %v639, %v671
        %v704 = vadd.f32 %v640, %v672
        %v705 = vadd.f32 %v641, %v673
        %v706 = vadd.f32 %v642, %v674
        %v707 = vadd.f32 %v643, %v675
        %v708 = vadd.f32 %v644, %v676
        %v709 = vadd.f32 %v645, %v677
        %v710 = vadd.f32 %v646, %v678
        %v711 = vadd.f32 %v647, %v679
        %v712 = vadd.f32 %v648, %v680
        %v713 = vadd.f32 %v649, %v681
        %v714 = vadd.f32 %v650, %v682
        %v715 = vadd.f32 %v651, %v683
        %v716 = vadd.f32 %v652, %v684
        %v717 = vadd.f32 %v653, %v685
        %v718 = vmul.f32 %v516, %v621
        %v719 = vmul.f32 %v517, %v621
        %v720 = vmul.f32 %v518, %v621
        %v721 = vmul.f32 %v519, %v621
        %v722 = vmul.f32 %v520, %v621
        %v723 = vmul.f32 %v521, %v621
        %v724 = vmul.f32 %v522, %v621
        %v725 = vmul.f32 %v523, %v621
        %v726 = vmul.f32 %v524, %v621
        %v727 = vmul.f32 %v525, %v621
        %v728 = vmul.f32 %v526, %v621
        %v729 = vmul.f32 %v527, %v621
        %v730 = vmul.f32 %v528, %v621
        %v731 = vmul.f32 %v529, %v621
        %v732 = vmul.f32 %v530, %v621
        %v733 = vmul.f32 %v531, %v621
        %v734 = vmul.f32 %v532, %v621
        %v735 = vmul.f32 %v533, %v621
        %v736 = vmul.f32 %v534, %v621
        %v737 = vmul.f32 %v535, %v621
        %v738 = vmul.f32 %v536, %v621
        %v739 = vmul.f32 %v537, %v621
        %v740 = vmul.f32 %v538, %v621
        %v741 = vmul.f32 %v539, %v621
        %v742 = vmul.f32 %v540, %v621
        %v743 = vmul.f32 %v541, %v621
        %v744 = vmul.f32 %v542, %v621
        %v745 = vmul.f32 %v543, %v621
        %v746 = vmul.f32 %v544, %v621
        %v747 = vmul.f32 %v545, %v621
        %v748 = vmul.f32 %v546, %v621
        %v749 = vmul.f32 %v547, %v621
        %v750 = vadd.f32 %v686, %v718
        %v751 = vadd.f32 %v687, %v719
        %v752 = vadd.f32 %v688, %v720
        %v753 = vadd.f32 %v689, %v721
        %v754 = vadd.f32 %v690, %v722
        %v755 = vadd.f32 %v691, %v723
        %v756 = vadd.f32 %v692, %v724
        %v757 = vadd.f32 %v693, %v725
        %v758 = vadd.f32 %v694, %v726
        %v759 = vadd.f32 %v695, %v727
        %v760 = vadd.f32 %v696, %v728
        %v761 = vadd.f32 %v697, %v729
        %v762 = vadd.f32 %v698, %v730
        %v763 = vadd.f32 %v699, %v731
        %v764 = vadd.f32 %v700, %v732
        %v765 = vadd.f32 %v701, %v733
        %v766 = vadd.f32 %v702, %v734
        %v767 = vadd.f32 %v703, %v735
        %v768 = vadd.f32 %v704, %v736
        %v769 = vadd.f32 %v705, %v737
        %v770 = vadd.f32 %v706, %v738
        %v771 = vadd.f32 %v707, %v739
        %v772 = vadd.f32 %v708, %v740
        %v773 = vadd.f32 %v709, %v741
        %v774 = vadd.f32 %v710, %v742
        %v775 = vadd.f32 %v711, %v743
        %v776 = vadd.f32 %v712, %v744
        %v777 = vadd.f32 %v713, %v745
        %v778 = vadd.f32 %v714, %v746
        %v779 = vadd.f32 %v715, %v747
        %v780 = vadd.f32 %v716, %v748
        %v781 = vadd.f32 %v717, %v749
        %782 = vst [vmem:[%s303] sm:$0xff] %v750
        %783 = vst [vmem:[%s303 + $0x8] sm:$0xff] %v751
        %784 = vst [vmem:[%s303 + $0x10] sm:$0xff] %v752
        %785 = vst [vmem:[%s303 + $0x18] sm:$0xff] %v753
        %786 = vst [vmem:[%s303 + $0x20] sm:$0xff] %v754
        %787 = vst [vmem:[%s303 + $0x28] sm:$0xff] %v755
        %788 = vst [vmem:[%s303 + $0x30] sm:$0xff] %v756
        %789 = vst [vmem:[%s303 + $0x38] sm:$0xff] %v757
        %790 = vst [vmem:[%s303 + $0x40] sm:$0xff] %v758
        %791 = vst [vmem:[%s303 + $0x48] sm:$0xff] %v759
        %792 = vst [vmem:[%s303 + $0x50] sm:$0xff] %v760
        %793 = vst [vmem:[%s303 + $0x58] sm:$0xff] %v761
        %794 = vst [vmem:[%s303 + $0x60] sm:$0xff] %v762
        %795 = vst [vmem:[%s303 + $0x68] sm:$0xff] %v763
        %796 = vst [vmem:[%s303 + $0x70] sm:$0xff] %v764
        %797 = vst [vmem:[%s303 + $0x78] sm:$0xff] %v765
        %798 = vst [vmem:[%s303 + $0x80] sm:$0xff] %v766
        %799 = vst [vmem:[%s303 + $0x88] sm:$0xff] %v767
        %800 = vst [vmem:[%s303 + $0x90] sm:$0xff] %v768
        %801 = vst [vmem:[%s303 + $0x98] sm:$0xff] %v769
        %802 = vst [vmem:[%s303 + $0xa0] sm:$0xff] %v770
        %803 = vst [vmem:[%s303 + $0xa8] sm:$0xff] %v771
        %804 = vst [vmem:[%s303 + $0xb0] sm:$0xff] %v772
        %805 = vst [vmem:[%s303 + $0xb8] sm:$0xff] %v773
        %806 = vst [vmem:[%s303 + $0xc0] sm:$0xff] %v774
        %807 = vst [vmem:[%s303 + $0xc8] sm:$0xff] %v775
        %808 = vst [vmem:[%s303 + $0xd0] sm:$0xff] %v776
        %809 = vst [vmem:[%s303 + $0xd8] sm:$0xff] %v777
        %810 = vst [vmem:[%s303 + $0xe0] sm:$0xff] %v778
        %811 = vst [vmem:[%s303 + $0xe8] sm:$0xff] %v779
        %812 = vst [vmem:[%s303 + $0xf0] sm:$0xff] %v780
        %813 = vst [vmem:[%s303 + $0xf8] sm:$0xff] %v781
        %s814 = sand.u32 %s132, 1
        %s815 = scalar_lea.sflag [#allocation4], %s814
        %s816 = sand.u32 %s132, 1
        %s817 = smul.addr %s816, 256
        %s818 = scalar_lea.vmem [#allocation10], %s817
        // Predicated region
        $region53: #{graph_channel_att.1} parent=35 // pred_check
          %p819 = pneg %p142
        $region54: #{graph_channel_att.1} parent=35 // pred_check_branch
          %821 = sbr.rel (%p819) target = $region56
        $region55: #{graph_channel_att.1} parent=35 // pred_region
          %s823 = ssub.s32 4096, 4096
          %824 = vsyncadd %s815, %s823
          %s825 = smul.addr %s25, 128
          %s826 = scalar_lea.hbm %s4, %s825
          %s827 = sshll.u32 %s818, 4
          %s828 = int_to_ptr.vmem [resolvable:$true] %s827
          %833 = dma.vmem_to_hbm [thread:$0]  %s828, 4096, %s826, %s815, 128, 512, 8
        $region56: #{graph_channel_att.1} parent=35 // pred_fallthru
          _
      $region36: #{graph_channel_att.1} parent=5 // pred_fallthru
        _
      %p834 = scmp.le.s32.totalorder 2, %s20
      // Predicated region
      $region57: #{graph_channel_att.1} parent=5 // pred_check
        %p835 = pneg %p834
      $region58: #{graph_channel_att.1} parent=5 // pred_check_branch
        %837 = sbr.rel (%p835) target = $region60
      $region59: #{graph_channel_att.1} parent=5 // pred_region
        %s838 = ssub.s32 %s20, 2
        // Predicated region
        $region61: #{graph_channel_att.1} parent=59 // pred_check
          %p839 = pneg %p148
        $region62: #{graph_channel_att.1} parent=59 // pred_check_branch
          %841 = sbr.rel (%p839) target = $region64
        $region63: #{graph_channel_att.1} parent=59 // pred_region
          %s842 = sand.u32 %s133, 1
          %s843 = scalar_lea.sflag [#allocation4], %s842
          %s844 = sand.u32 %s133, 1
          %s845 = smul.addr %s844, 256
          %s846 = scalar_lea.vmem [#allocation10], %s845
          %847 = dma.done %s843, 4096
        $region64: #{graph_channel_att.1} parent=59 // pred_fallthru
          _
      $region60: #{graph_channel_att.1} parent=5 // pred_fallthru
        _
    $region6: #{graph_channel_att.1} parent=1 // loop_footer
      %s24 = sadd.s32 1, %s20
    $region7: #{graph_channel_att.1} parent=1 // loop_footer_branch
      %19 = sbr.rel target = $region3
    $region8: #{graph_channel_att.1} parent=1 // loop_exit
      _
    %848 = vsyncpa [#allocation3], 1
    %s849 = scalar_lea.sflag [#allocation3], 1
    %850 = vsyncpa %s849, 1
    %851 = vsyncpa [#allocation8], 1
    %s852 = scalar_lea.sflag [#allocation8], 1
    %853 = vsyncpa %s852, 1
    %854 = vsyncpa [#allocation4], 1
    %s855 = scalar_lea.sflag [#allocation4], 1
    %856 = vsyncpa %s855, 1
    %857 = vsyncpa [#allocation5], 1
    %s858 = scalar_lea.sflag [#allocation5], 1
    %859 = vsyncpa %s858, 1

</llo_original>
